<compile_context>
chip_gen: v5e
topology: v5e:2x2
jax: 0.10.0
libtpu: 0.0.40
codegen_flags: <defaults>
</compile_context>

<pallas_src>
import jax
import jax.numpy as jnp
from jax import lax
from jax.experimental import pallas as pl
from jax.experimental.pallas import tpu as pltpu

LANES = 128


def coxph_kernel(x_ref, tri_ref, rowx_ref, out_ref, acc_ref):
    """One grid step = one (R, 128) slab of samples in sorted order.

    x_ref   : (3, R, 128)  rows: [risk (max-shifted), event, valid]
    tri_ref : (128, 128)   tri[j, i]  = 1.0 iff j <= i  (lane inclusive prefix)
    rowx_ref: (R, R)       rowx[r, s] = 1.0 iff s <  r  (row exclusive prefix)
    out_ref : (1, 1)       final loss
    acc_ref : (1, 128)     lane 0 = carry (sum of exp over previous blocks),
                           lane 1 = sum of log-likelihood, lane 2 = valid count
    """
    t = pl.program_id(0)

    @pl.when(t == 0)
    def _init():
        acc_ref[...] = jnp.zeros_like(acc_ref)

    risk = x_ref[0]       # (R, 128)  sorted ascending by duration, max-shifted
    evt = x_ref[1]        # (R, 128)
    valid = x_ref[2]      # (R, 128)  1.0 / 0.0

    acc = acc_ref[...]            # (1, 128)
    carry = acc[0:1, 0:1]         # (1, 1): sum(exp) over all previous blocks

    # exp(risk), zeroed for invalid / padded samples so they never enter the
    # risk set.
    e = jnp.exp(risk) * valid     # (R, 128)

    # Two-level inclusive prefix sum over the row-major sample order:
    #   lane level: inclusive prefix within each row (fixed 128x128 constant)
    #   row  level: exclusive prefix of the row totals (tiny (R,R) constant)
    row_prefix = jnp.dot(e, tri_ref[...],
                         preferred_element_type=jnp.float32,
                         precision=lax.Precision.HIGHEST)           # (R, 128)
    row_tot = jnp.sum(e, axis=1, keepdims=True)                     # (R, 1)
    row_off = jnp.dot(rowx_ref[...], row_tot,
                      preferred_element_type=jnp.float32,
                      precision=lax.Precision.HIGHEST)              # (R, 1)

    exp_risk_sum = row_prefix + row_off + carry                     # (R, 128)

    # TODO(synk): the 1e-30 floor deviates from PyTorch f32 only when
    # exp(risk - max) underflows (risk spread > ~87); exact parity there would
    # need a running log-sum-exp carry instead of a linear one.
    ll = jnp.where(valid > 0.0,
                   (risk - jnp.log(jnp.maximum(exp_risk_sum, 1e-30))) * evt,
                   0.0)

    d_carry = jnp.sum(e)
    d_ll = jnp.sum(ll)
    d_cnt = jnp.sum(valid)

    lane = lax.broadcasted_iota(jnp.int32, (1, LANES), 1)
    upd = (jnp.where(lane == 0, d_carry, 0.0)
           + jnp.where(lane == 1, d_ll, 0.0)
           + jnp.where(lane == 2, d_cnt, 0.0))
    acc_ref[...] = acc + upd      # single RMW of the merged accumulator

    @pl.when(t == pl.num_programs(0) - 1)
    def _finalize():
        a = acc_ref[...]
        tot = a[0:1, 1:2]
        cnt = a[0:1, 2:3]
        out_ref[...] = jnp.where(cnt > 0.0, -tot / jnp.maximum(cnt, 1.0), 0.0)


def coxph_loss(risk, duration, event, *, max_block_rows=64):
    """Negative Cox partial log-likelihood. risk may carry a trailing dim of 1."""
    risk = jnp.squeeze(jnp.asarray(risk, jnp.float32)).reshape(-1)
    duration = jnp.asarray(duration, jnp.float32).reshape(-1)
    event = jnp.asarray(event, jnp.float32).reshape(-1)

    n = risk.shape[0]
    if n == 0:
        return jnp.float32(0.0)

    valid = (duration != -1.0) & (event != -1.0)
    valid_f = valid.astype(jnp.float32)

    # Masked max-subtraction: prevents exp overflow; cancels exactly in
    # risk - log(cumsum(exp(risk))).
    m = jnp.max(jnp.where(valid, risk, -jnp.inf))
    m = jnp.where(jnp.isfinite(m), m, 0.0)

    # TODO(synk): the data-dependent filter + argsort has no clean Pallas
    # equivalent; it stays in XLA.  Invalid samples get a +inf key (sorted to
    # the end) and are masked in-kernel.  A single stacked gather + single pad
    # feeds the kernel one packed array (one DMA per grid step).
    sort_key = jnp.where(valid, duration, jnp.inf)
    idx = jnp.argsort(sort_key, stable=True)                  # stable ascending
    stacked = jnp.stack([risk - m, event, valid_f], axis=0)   # (3, n)
    stacked = jnp.take(stacked, idx, axis=1)                  # one gather

    rows_needed = pl.cdiv(n, LANES)
    block_rows = min(max_block_rows, ((rows_needed + 7) // 8) * 8)
    rows_total = pl.cdiv(rows_needed, block_rows) * block_rows
    n_pad = rows_total * LANES

    stacked = jnp.pad(stacked, ((0, 0), (0, n_pad - n)))      # pads are invalid
    x = stacked.reshape(3, rows_total, LANES)                 # row-major order

    # Fixed-size prefix constants (never scale with block/tile size).
    j = jnp.arange(LANES)
    tri = (j[:, None] <= j[None, :]).astype(jnp.float32)      # (128, 128)
    r = jnp.arange(block_rows)
    rowx = (r[None, :] < r[:, None]).astype(jnp.float32)      # (R, R)

    n_blocks = rows_total // block_rows
    out = pl.pallas_call(
        coxph_kernel,
        out_shape=jax.ShapeDtypeStruct((1, 1), jnp.float32),
        grid=(n_blocks,),
        in_specs=[
            # One DMA per step: packed (risk, event, valid) slab.
            pl.BlockSpec((3, block_rows, LANES), lambda t: (0, t, 0)),
            # Constants: same block every step -> DMA'd once, then resident.
            pl.BlockSpec((LANES, LANES), lambda t: (0, 0)),
            pl.BlockSpec((block_rows, block_rows), lambda t: (0, 0)),
        ],
        out_specs=pl.BlockSpec((1, 1), lambda t: (0, 0)),
        scratch_shapes=[
            pltpu.VMEM((1, LANES), jnp.float32),   # [carry, sum_ll, count, ...]
        ],
        compiler_params=pltpu.CompilerParams(
            # Single sequential axis: the prefix sum carries state across
            # blocks.  (A megacore-parallel two-pass split only pays once the
            # kernel outweighs the XLA-side argsort.)
            dimension_semantics=("arbitrary",),
            # <1 MiB footprint even double-buffered; keep the limit well under
            # v7x's 64 MiB physical / 32 MiB scoped-default VMEM.
            vmem_limit_bytes=16 * 1024 * 1024,
        ),
    )(x, tri, rowx)
    return out[0, 0]


if __name__ == "__main__":
    import numpy as np

    def ref_loss(risk, duration, event):
        # Pure-numpy reference mirroring the PyTorch module.
        risk = np.asarray(risk, np.float64).squeeze().reshape(-1)
        duration = np.asarray(duration, np.float64).reshape(-1)
        event = np.asarray(event, np.float64).reshape(-1)
        valid = (duration != -1) & (event != -1)
        if valid.sum() == 0:
            return 0.0
        r, d, e = risk[valid], duration[valid], event[valid]
        order = np.argsort(d, kind="stable")
        r, e = r[order], e[order]
        crs = np.cumsum(np.exp(r))
        ll = (r - np.log(crs)) * e
        return float(-ll.mean())

    # Case 1: tiny batch with missing values (single block, heavy padding,
    # risk carries the trailing singleton dim a model head would produce).
    k1, k2, k3 = jax.random.split(jax.random.PRNGKey(0), 3)
    n = 8
    risk = jax.random.normal(k1, (n, 1), dtype=jnp.float32)
    duration = jax.random.uniform(k2, (n,), minval=1.0, maxval=50.0,
                                  dtype=jnp.float32)
    event = (jax.random.uniform(k3, (n,)) > 0.4).astype(jnp.float32)
    duration = duration.at[2].set(-1.0)   # missing duration  -> filtered
    event = event.at[5].set(-1.0)         # missing indicator -> filtered
    loss = coxph_loss(risk, duration, event)
    jax.block_until_ready(loss)
    exp1 = ref_loss(risk, duration, event)
    assert abs(float(loss) - exp1) < 1e-4, (float(loss), exp1)

    # Case 2: multi-block (block_rows=8 -> 3 sequential grid steps,
    # exercising the cross-block carry and the in-block row offsets).
    k4, k5, k6 = jax.random.split(jax.random.PRNGKey(1), 3)
    n2 = 2500
    risk2 = jax.random.normal(k4, (n2, 1), dtype=jnp.float32)
    duration2 = jax.random.uniform(k5, (n2,), minval=1.0, maxval=500.0,
                                   dtype=jnp.float32)
    event2 = (jax.random.uniform(k6, (n2,)) > 0.5).astype(jnp.float32)
    duration2 = duration2.at[10].set(-1.0)
    event2 = event2.at[20].set(-1.0)
    loss2 = coxph_loss(risk2, duration2, event2, max_block_rows=8)
    jax.block_until_ready(loss2)
    exp2 = ref_loss(risk2, duration2, event2)
    assert abs(float(loss2) - exp2) < 1e-4, (float(loss2), exp2)

    # Case 3: default block size, several sublane rows in one block (R=16).
    k7, k8, k9 = jax.random.split(jax.random.PRNGKey(2), 3)
    n3 = 1500
    risk3 = jax.random.normal(k7, (n3,), dtype=jnp.float32)
    duration3 = jax.random.uniform(k8, (n3,), minval=1.0, maxval=200.0,
                                   dtype=jnp.float32)
    event3 = (jax.random.uniform(k9, (n3,)) > 0.3).astype(jnp.float32)
    loss3 = coxph_loss(risk3, duration3, event3)
    jax.block_until_ready(loss3)
    exp3 = ref_loss(risk3, duration3, event3)
    assert abs(float(loss3) - exp3) < 1e-4, (float(loss3), exp3)

    # Case 4: no valid samples -> loss is exactly 0.0.
    risk4 = jax.random.normal(jax.random.PRNGKey(3), (16,), dtype=jnp.float32)
    duration4 = jnp.full((16,), -1.0, dtype=jnp.float32)
    event4 = jnp.zeros((16,), dtype=jnp.float32)
    loss4 = coxph_loss(risk4, duration4, event4)
    jax.block_until_ready(loss4)
    assert float(loss4) == 0.0, float(loss4)

    print("KERNEL_OK")
</pallas_src>

<mosaic_0001>
module attributes {stable_mosaic.version = 11 : i64} {
  func.func @coxph_kernel(%arg0: i32, %arg1: memref<3x8x128xf32, #tpu.memory_space<vmem>>, %arg2: memref<128x128xf32, #tpu.memory_space<vmem>>, %arg3: memref<8x8xf32, #tpu.memory_space<vmem>>, %arg4: memref<1x1xf32, #tpu.memory_space<vmem>>, %arg5: memref<1x128xf32, #tpu.memory_space<vmem>>) attributes {dimension_semantics = [#tpu.dimension_semantics<arbitrary>], iteration_bounds = array<i64: 1>, scalar_prefetch = 0 : i64, scratch_operands = 1 : i64, tpu.core_type = #tpu.core_type<tc>, window_params = [{transform_indices = @transform_0, window_bounds = array<i64: 3, 8, 128>}, {pipeline_mode = #tpu.pipeline_mode<synchronous>, transform_indices = @transform_1, window_bounds = array<i64: 128, 128>}, {pipeline_mode = #tpu.pipeline_mode<synchronous>, transform_indices = @transform_2, window_bounds = array<i64: 8, 8>}, {pipeline_mode = #tpu.pipeline_mode<synchronous>, transform_indices = @transform_3, window_bounds = array<i64: 1, 1>}]} {
    %c0_i32 = arith.constant 0 : i32
    %0 = arith.cmpi eq, %arg0, %c0_i32 : i32
    %1 = arith.extui %0 : i1 to i32
    %c0_i32_0 = arith.constant 0 : i32
    %2 = arith.cmpi ne, %1, %c0_i32_0 : i32
    scf.if %2 {
      %cst_29 = arith.constant 0.000000e+00 : f32
      %67 = vector.broadcast %cst_29 : f32 to vector<1x128xf32>
      %c0_30 = arith.constant 0 : index
      %c0_31 = arith.constant 0 : index
      %68 = vector.load %arg5[%c0_30, %c0_31] : memref<1x128xf32, #tpu.memory_space<vmem>>, vector<1x128xf32>
      tpu.vector_store %arg5[%c0_30, %c0_31], %67 {strides = array<i32>} : memref<1x128xf32, #tpu.memory_space<vmem>>, vector<1x128xf32>,
    } else {
    }
    %c0 = arith.constant 0 : index
    %c0_1 = arith.constant 0 : index
    %c0_2 = arith.constant 0 : index
    %3 = vector.load %arg1[%c0, %c0_1, %c0_2] : memref<3x8x128xf32, #tpu.memory_space<vmem>>, vector<1x8x128xf32>
    %4 = vector.shape_cast %3 : vector<1x8x128xf32> to vector<8x128xf32>
    %c1 = arith.constant 1 : index
    %c0_3 = arith.constant 0 : index
    %c0_4 = arith.constant 0 : index
    %5 = vector.load %arg1[%c1, %c0_3, %c0_4] : memref<3x8x128xf32, #tpu.memory_space<vmem>>, vector<1x8x128xf32>
    %6 = vector.shape_cast %5 : vector<1x8x128xf32> to vector<8x128xf32>
    %c2 = arith.constant 2 : index
    %c0_5 = arith.constant 0 : index
    %c0_6 = arith.constant 0 : index
    %7 = vector.load %arg1[%c2, %c0_5, %c0_6] : memref<3x8x128xf32, #tpu.memory_space<vmem>>, vector<1x8x128xf32>
    %8 = vector.shape_cast %7 : vector<1x8x128xf32> to vector<8x128xf32>
    %c0_7 = arith.constant 0 : index
    %c0_8 = arith.constant 0 : index
    %9 = vector.load %arg5[%c0_7, %c0_8] : memref<1x128xf32, #tpu.memory_space<vmem>>, vector<1x128xf32>
    %10 = vector.extract_strided_slice %9 {offsets = [0, 0], sizes = [1, 1], strides = [1, 1]} : vector<1x128xf32> to vector<1x1xf32>
    %11 = math.exp %4 : vector<8x128xf32>
    %12 = arith.mulf %11, %8 : vector<8x128xf32>
    %c0_9 = arith.constant 0 : index
    %c0_10 = arith.constant 0 : index
    %13 = vector.load %arg2[%c0_9, %c0_10] : memref<128x128xf32, #tpu.memory_space<vmem>>, vector<128x128xf32>
    %cst = arith.constant dense<0.000000e+00> : vector<8x128xf32>
    %14 = tpu.matmul %12, %13, %cst {dimension_numbers = #tpu.dot_dimension_numbers<[1], [0], [0], [1], [0, 0, 1, 1], [], []>, precision = #tpu.contract_precision<fp32>} : vector<8x128xf32>, vector<128x128xf32>, vector<8x128xf32> -> vector<8x128xf32>
    %cst_11 = arith.constant dense<0.000000e+00> : vector<8xf32>
    %15 = vector.multi_reduction <add>, %12, %cst_11 [1] : vector<8x128xf32> to vector<8xf32>
    %16 = vector.shape_cast %15 : vector<8xf32> to vector<8x1xf32>
    %c0_12 = arith.constant 0 : index
    %c0_13 = arith.constant 0 : index
    %17 = vector.load %arg3[%c0_12, %c0_13] : memref<8x8xf32, #tpu.memory_space<vmem>>, vector<8x8xf32>
    %cst_14 = arith.constant dense<0.000000e+00> : vector<8x1xf32>
    %18 = tpu.matmul %17, %16, %cst_14 {dimension_numbers = #tpu.dot_dimension_numbers<[1], [0], [0], [1], [0, 0, 1, 1], [], []>, precision = #tpu.contract_precision<fp32>} : vector<8x8xf32>, vector<8x1xf32>, vector<8x1xf32> -> vector<8x1xf32>
    %19 = vector.broadcast %18 : vector<8x1xf32> to vector<8x128xf32>
    %20 = arith.addf %14, %19 : vector<8x128xf32>
    %21 = vector.broadcast %10 : vector<1x1xf32> to vector<8x128xf32>
    %22 = arith.addf %20, %21 : vector<8x128xf32>
    %cst_15 = arith.constant 0.000000e+00 : f32
    %23 = vector.broadcast %cst_15 : f32 to vector<8x128xf32>
    %24 = arith.cmpf ogt, %8, %23 : vector<8x128xf32>
    %cst_16 = arith.constant 1.000000e-30 : f32
    %25 = vector.broadcast %cst_16 : f32 to vector<8x128xf32>
    %26 = arith.maximumf %22, %25 : vector<8x128xf32>
    %27 = math.log %26 : vector<8x128xf32>
    %28 = arith.subf %4, %27 : vector<8x128xf32>
    %29 = arith.mulf %28, %6 : vector<8x128xf32>
    %cst_17 = arith.constant 0.000000e+00 : f32
    %30 = vector.broadcast %cst_17 : f32 to vector<8x128xf32>
    %31 = arith.select %24, %29, %30 : vector<8x128xi1>, vector<8x128xf32>
    %32 = vector.shape_cast %12 : vector<8x128xf32> to vector<1x8x128xf32>
    %cst_18 = arith.constant dense<0.000000e+00> : vector<1xf32>
    %33 = vector.multi_reduction <add>, %32, %cst_18 [1, 2] : vector<1x8x128xf32> to vector<1xf32>
    %34 = vector.shape_cast %33 : vector<1xf32> to vector<1x1x1xf32>
    %35 = vector.extract %34[0, 0, 0] : f32 from vector<1x1x1xf32>
    %36 = vector.shape_cast %31 : vector<8x128xf32> to vector<1x8x128xf32>
    %cst_19 = arith.constant dense<0.000000e+00> : vector<1xf32>
    %37 = vector.multi_reduction <add>, %36, %cst_19 [1, 2] : vector<1x8x128xf32> to vector<1xf32>
    %38 = vector.shape_cast %37 : vector<1xf32> to vector<1x1x1xf32>
    %39 = vector.extract %38[0, 0, 0] : f32 from vector<1x1x1xf32>
    %40 = vector.shape_cast %8 : vector<8x128xf32> to vector<1x8x128xf32>
    %cst_20 = arith.constant dense<0.000000e+00> : vector<1xf32>
    %41 = vector.multi_reduction <add>, %40, %cst_20 [1, 2] : vector<1x8x128xf32> to vector<1xf32>
    %42 = vector.shape_cast %41 : vector<1xf32> to vector<1x1x1xf32>
    %43 = vector.extract %42[0, 0, 0] : f32 from vector<1x1x1xf32>
    %44 = tpu.iota {dimensions = array<i32: 1>} : vector<1x128xi32>
    %c0_i32_21 = arith.constant 0 : i32
    %45 = vector.broadcast %c0_i32_21 : i32 to vector<1x128xi32>
    %46 = arith.cmpi eq, %44, %45 : vector<1x128xi32>
    %cst_22 = arith.constant 0.000000e+00 : f32
    %47 = vector.broadcast %35 : f32 to vector<1x128xf32>
    %48 = vector.broadcast %cst_22 : f32 to vector<1x128xf32>
    %49 = arith.select %46, %47, %48 : vector<1x128xi1>, vector<1x128xf32>
    %c1_i32 = arith.constant 1 : i32
    %50 = vector.broadcast %c1_i32 : i32 to vector<1x128xi32>
    %51 = arith.cmpi eq, %44, %50 : vector<1x128xi32>
    %cst_23 = arith.constant 0.000000e+00 : f32
    %52 = vector.broadcast %39 : f32 to vector<1x128xf32>
    %53 = vector.broadcast %cst_23 : f32 to vector<1x128xf32>
    %54 = arith.select %51, %52, %53 : vector<1x128xi1>, vector<1x128xf32>
    %55 = arith.addf %49, %54 : vector<1x128xf32>
    %c2_i32 = arith.constant 2 : i32
    %56 = vector.broadcast %c2_i32 : i32 to vector<1x128xi32>
    %57 = arith.cmpi eq, %44, %56 : vector<1x128xi32>
    %cst_24 = arith.constant 0.000000e+00 : f32
    %58 = vector.broadcast %43 : f32 to vector<1x128xf32>
    %59 = vector.broadcast %cst_24 : f32 to vector<1x128xf32>
    %60 = arith.select %57, %58, %59 : vector<1x128xi1>, vector<1x128xf32>
    %61 = arith.addf %55, %60 : vector<1x128xf32>
    %62 = arith.addf %9, %61 : vector<1x128xf32>
    %c0_25 = arith.constant 0 : index
    %c0_26 = arith.constant 0 : index
    %63 = vector.load %arg5[%c0_25, %c0_26] : memref<1x128xf32, #tpu.memory_space<vmem>>, vector<1x128xf32>
    tpu.vector_store %arg5[%c0_25, %c0_26], %62 {strides = array<i32>} : memref<1x128xf32, #tpu.memory_space<vmem>>, vector<1x128xf32>,
    %c0_i32_27 = arith.constant 0 : i32
    %64 = arith.cmpi eq, %arg0, %c0_i32_27 : i32
    %65 = arith.extui %64 : i1 to i32
    %c0_i32_28 = arith.constant 0 : i32
    %66 = arith.cmpi ne, %65, %c0_i32_28 : i32
    scf.if %66 {
      %c0_29 = arith.constant 0 : index
      %c0_30 = arith.constant 0 : index
      %67 = vector.load %arg5[%c0_29, %c0_30] : memref<1x128xf32, #tpu.memory_space<vmem>>, vector<1x128xf32>
      %68 = vector.extract_strided_slice %67 {offsets = [0, 1], sizes = [1, 1], strides = [1, 1]} : vector<1x128xf32> to vector<1x1xf32>
      %69 = vector.extract_strided_slice %67 {offsets = [0, 2], sizes = [1, 1], strides = [1, 1]} : vector<1x128xf32> to vector<1x1xf32>
      %cst_31 = arith.constant 0.000000e+00 : f32
      %70 = vector.broadcast %cst_31 : f32 to vector<1x1xf32>
      %71 = arith.cmpf ogt, %69, %70 : vector<1x1xf32>
      %cst_32 = arith.constant 0.000000e+00 : f32
      %72 = vector.broadcast %cst_32 : f32 to vector<1x1xf32>
      %73 = arith.subf %72, %68 : vector<1x1xf32>
      %cst_33 = arith.constant 1.000000e+00 : f32
      %74 = vector.broadcast %cst_33 : f32 to vector<1x1xf32>
      %75 = arith.maximumf %69, %74 : vector<1x1xf32>
      %76 = arith.divf %73, %75 : vector<1x1xf32>
      %cst_34 = arith.constant 0.000000e+00 : f32
      %77 = vector.broadcast %cst_34 : f32 to vector<1x1xf32>
      %78 = arith.select %71, %76, %77 : vector<1x1xi1>, vector<1x1xf32>
      %c0_35 = arith.constant 0 : index
      %c0_36 = arith.constant 0 : index
      %79 = vector.load %arg4[%c0_35, %c0_36] : memref<1x1xf32, #tpu.memory_space<vmem>>, vector<1x1xf32>
      tpu.vector_store %arg4[%c0_35, %c0_36], %78 {strides = array<i32>} : memref<1x1xf32, #tpu.memory_space<vmem>>, vector<1x1xf32>,
    } else {
    }
    return
  }
  func.func @transform_0(%arg0: i32) -> (i32, i32, i32) {
    %c0_i32 = arith.constant 0 : i32
    %c0_i32_0 = arith.constant 0 : i32
    %c0_i32_1 = arith.constant 0 : i32
    return %c0_i32, %arg0, %c0_i32_0 : i32, i32, i32
  }
  func.func @transform_1(%arg0: i32) -> (i32, i32) {
    %c0_i32 = arith.constant 0 : i32
    %c0_i32_0 = arith.constant 0 : i32
    %c0_i32_1 = arith.constant 0 : i32
    return %c0_i32, %c0_i32_0 : i32, i32
  }
  func.func @transform_2(%arg0: i32) -> (i32, i32) {
    %c0_i32 = arith.constant 0 : i32
    %c0_i32_0 = arith.constant 0 : i32
    %c0_i32_1 = arith.constant 0 : i32
    return %c0_i32, %c0_i32_0 : i32, i32
  }
  func.func @transform_3(%arg0: i32) -> (i32, i32) {
    %c0_i32 = arith.constant 0 : i32
    %c0_i32_0 = arith.constant 0 : i32
    %c0_i32_1 = arith.constant 0 : i32
    return %c0_i32, %c0_i32_0 : i32, i32
  }
}

</mosaic_0001>

<llo_original>
// kernel: tpu_custom_call.1
$region0: #{tpu_custom_call.1}
  #allocation0 [shape = 'u32[]', space=smem, size = 0x4, offset = 0x4, fixed_abs, tag = 'smem constant byte address 0x4 - core index']
  #allocation1 [shape = 'u32[72,128]{1,0:T(1,128)}', space=vmem, size = 0x9000, scoped, tag = 'internal scratch']
  #allocation2 [shape = 'f32[1,128]{1,0:T(1,128)}', space=vmem, size = 0x200, scoped, tag = 'scratch operand']
  %s0 = inlined_call_operand.hbm [shape: f32[3,8,128], index: 0, kind: input, shape index: {}]
  %s1 = inlined_call_operand.hbm [shape: f32[128,128], index: 1, kind: input, shape index: {}]
  %s2 = inlined_call_operand.hbm [shape: f32[8,8], index: 2, kind: input, shape index: {}]
  %s3 = inlined_call_operand.hbm [shape: f32[1,1], index: 3, kind: output, shape index: {}]
  %s4 = sld [smem:[#allocation0]]
  $region42: #{tpu_custom_call.1} parent=0
    _
  %s6 = ssub.s32 1, %s4
  %s7 = scalar_select 0, %s6, %s4
  $region1: #{tpu_custom_call.1} parent=0
    #allocation3 [shape = 'u8[12288]{0}', space=vmem, size = 0x3000, scoped, tag = 'input window, operand 0, single buffered']
    #allocation4 [shape = 's32[1]{0}', space=sflag, size = 0x4, scoped, tag = 'scoped memory for tpu_custom_call.1']
    #allocation5 [shape = 's32[1]{0}', space=sflag, size = 0x4, scoped, tag = 'scoped memory for tpu_custom_call.1']
    #allocation6 [shape = 'u8[65536]{0}', space=vmem, size = 0x10000, scoped, tag = 'input window, operand 1, single buffered']
    #allocation7 [shape = 's32[1]{0}', space=sflag, size = 0x4, scoped, tag = 'scoped memory for tpu_custom_call.1']
    #allocation8 [shape = 'u8[4096]{0}', space=vmem, size = 0x1000, scoped, tag = 'input window, operand 2, single buffered']
    #allocation9 [shape = 'u8[512]{0}', space=vmem, size = 0x400, scoped, tag = 'output window, operand 0, single buffered']
    %8 = vsyncpa [#allocation4], 0
    %9 = vsyncpa [#allocation7], 0
    %10 = vsyncpa [#allocation5], 0
    // Predicated region
    $region2: #{tpu_custom_call.1} parent=1 // pred_check
      _
    $region3: #{tpu_custom_call.1} parent=1 // pred_check_branch
      %12 = sbr.rel (0) target = $region5
    $region4: #{tpu_custom_call.1} parent=1 // pred_region
      %14 = vsyncadd [#allocation4], 0
      %s15 = sshll.u32 %s0, 4
      %s16 = int_to_ptr.hbm [resolvable:$true] %s15
      %s17 = sshll.u32 [#allocation3], 4
      %s18 = int_to_ptr.vmem [resolvable:$true] %s17
      %23 = dma.hbm_to_vmem [thread:$0]  %s16, 384, %s18, [#allocation4], 128, 128, 8
    $region5: #{tpu_custom_call.1} parent=1 // pred_fallthru
      _
    // Predicated region
    $region6: #{tpu_custom_call.1} parent=1 // pred_check
      _
    $region7: #{tpu_custom_call.1} parent=1 // pred_check_branch
      %25 = sbr.rel (0) target = $region9
    $region8: #{tpu_custom_call.1} parent=1 // pred_region
      %27 = vsyncadd [#allocation7], 0
      %s28 = sshll.u32 %s1, 4
      %s29 = int_to_ptr.hbm [resolvable:$true] %s28
      %s30 = sshll.u32 [#allocation6], 4
      %s31 = int_to_ptr.vmem [resolvable:$true] %s30
      %36 = dma.hbm_to_vmem [thread:$0]  %s29, 2048, %s31, [#allocation7], 128, 128, 8
    $region9: #{tpu_custom_call.1} parent=1 // pred_fallthru
      _
    // Predicated region
    $region10: #{tpu_custom_call.1} parent=1 // pred_check
      _
    $region11: #{tpu_custom_call.1} parent=1 // pred_check_branch
      %38 = sbr.rel (0) target = $region13
    $region12: #{tpu_custom_call.1} parent=1 // pred_region
      %40 = vsyncadd [#allocation7], 0
      %s42 = sshll.u32 %s2, 4
      %s43 = int_to_ptr.hbm [resolvable:$true] %s42
      %s44 = sshll.u32 [#allocation8], 4
      %s45 = int_to_ptr.vmem [resolvable:$true] %s44
      %47 = dma.hbm_to_vmem [thread:$0]  %s43, 128, %s45, [#allocation7]
    $region13: #{tpu_custom_call.1} parent=1 // pred_fallthru
      _
    // Predicated region
    $region14: #{tpu_custom_call.1} parent=1 // pred_check
      _
    $region15: #{tpu_custom_call.1} parent=1 // pred_check_branch
      %49 = sbr.rel (0) target = $region17
    $region16: #{tpu_custom_call.1} parent=1 // pred_region
      %51 = dma.done [#allocation4], 384
    $region17: #{tpu_custom_call.1} parent=1 // pred_fallthru
      _
    // Predicated region
    $region18: #{tpu_custom_call.1} parent=1 // pred_check
      _
    $region19: #{tpu_custom_call.1} parent=1 // pred_check_branch
      %53 = sbr.rel (0) target = $region21
    $region20: #{tpu_custom_call.1} parent=1 // pred_region
      %55 = dma.done [#allocation7], 2048
    $region21: #{tpu_custom_call.1} parent=1 // pred_fallthru
      _
    // Predicated region
    $region22: #{tpu_custom_call.1} parent=1 // pred_check
      _
    $region23: #{tpu_custom_call.1} parent=1 // pred_check_branch
      %57 = sbr.rel (0) target = $region25
    $region24: #{tpu_custom_call.1} parent=1 // pred_region
      %59 = dma.done [#allocation7], 128
    $region25: #{tpu_custom_call.1} parent=1 // pred_fallthru
      _
    %p60 = scmp.eq.s32.totalorder 0, 0
    // Predicated region
    $region26: #{tpu_custom_call.1} parent=1 // pred_check
      %p61 = pneg %p60
    $region27: #{tpu_custom_call.1} parent=1 // pred_check_branch
      %63 = sbr.rel (%p61) target = $region29
    $region28: #{tpu_custom_call.1} parent=1 // pred_region
      %64 = vst [vmem:[#allocation2] sm:$0x1] 0.0
    $region29: #{tpu_custom_call.1} parent=1 // pred_fallthru
      _
    %v65 = vld [vmem:[#allocation3] sm:$0xff]
    %s66 = scalar_lea.vmem [#allocation3], 8
    %v67 = vld [vmem:[%s66] sm:$0xff]
    %s68 = scalar_lea.vmem [#allocation3], 16
    %v69 = vld [vmem:[%s68] sm:$0xff]
    %v70 = vld [vmem:[#allocation2] sm:$0x1]
    %v71 = vmul.f32 %v65, 1.442695
    %v72 = vpow.pop %v71
    %v73 = vmul.f32 %v72, %v69
    %v74 = vld [vmem:[#allocation6] sm:$0xff]
    %v75 = vld [vmem:[#allocation6 + $0x8] sm:$0xff]
    %v76 = vld [vmem:[#allocation6 + $0x10] sm:$0xff]
    %v77 = vld [vmem:[#allocation6 + $0x18] sm:$0xff]
    %v78 = vld [vmem:[#allocation6 + $0x20] sm:$0xff]
    %v79 = vld [vmem:[#allocation6 + $0x28] sm:$0xff]
    %v80 = vld [vmem:[#allocation6 + $0x30] sm:$0xff]
    %v81 = vld [vmem:[#allocation6 + $0x38] sm:$0xff]
    %v82 = vld [vmem:[#allocation6 + $0x40] sm:$0xff]
    %v83 = vld [vmem:[#allocation6 + $0x48] sm:$0xff]
    %v84 = vld [vmem:[#allocation6 + $0x50] sm:$0xff]
    %v85 = vld [vmem:[#allocation6 + $0x58] sm:$0xff]
    %v86 = vld [vmem:[#allocation6 + $0x60] sm:$0xff]
    %v87 = vld [vmem:[#allocation6 + $0x68] sm:$0xff]
    %v88 = vld [vmem:[#allocation6 + $0x70] sm:$0xff]
    %v89 = vld [vmem:[#allocation6 + $0x78] sm:$0xff]
    %90 = vadd.xlane.f32.xlu0 %v73
    %v91 = vpop.xlane.xlu0 %90
    %v92 = vld [vmem:[#allocation8] sm:$0xff]
    %vm93 = vcmask 64512
    %v95 = vsel %vm93, %v92, 0
    %97 = vmatpush.msra.mxu0 0.0
    %98 = vmatpush.msra.mxu0 0.0
    %99 = vmatpush.msra.mxu0 0.0
    %100 = vmatpush.msra.mxu0 0.0
    %101 = vmatpush.msra.mxu0 0.0
    %102 = vmatpush.msra.mxu0 0.0
    %103 = vmatpush.msra.mxu0 0.0
    %104 = vmatpush.msra.mxu0 0.0
    %105 = vmatpush.msra.mxu0 0.0
    %106 = vmatpush.msra.mxu0 0.0
    %107 = vmatpush.msra.mxu0 0.0
    %108 = vmatpush.msra.mxu0 0.0
    %109 = vmatpush.msra.mxu0 0.0
    %110 = vmatpush.msra.mxu0 0.0
    %111 = vmatpush.msra.mxu0 0.0
    %v112 = vand.u32 %v91, 4294901760
    %113 = vmatpush.msra.mxu0 %v112
    %v114 = vand.u32 %v95, 4294901760
    %v115 = vsub.f32 %v95, %v114
    %v116 = vand.u32 %v115, 4294901760
    %v117 = vsub.f32 %v115, %v116
    %v118 = vand.u32 %v117, 4294901760
    %119 = vmatmul.f32.gmra.mxu0 %v118
    %v120 = vpop.f32.mrf.mxu0
    %v121 = vadd.f32 0.0, %v120
    %122 = vdwg.mxu0
    %123 = vmatpush.msra.mxu0 0.0
    %124 = vmatpush.msra.mxu0 0.0
    %125 = vmatpush.msra.mxu0 0.0
    %126 = vmatpush.msra.mxu0 0.0
    %127 = vmatpush.msra.mxu0 0.0
    %128 = vmatpush.msra.mxu0 0.0
    %129 = vmatpush.msra.mxu0 0.0
    %130 = vmatpush.msra.mxu0 0.0
    %131 = vmatpush.msra.mxu0 0.0
    %132 = vmatpush.msra.mxu0 0.0
    %133 = vmatpush.msra.mxu0 0.0
    %134 = vmatpush.msra.mxu0 0.0
    %135 = vmatpush.msra.mxu0 0.0
    %136 = vmatpush.msra.mxu0 0.0
    %137 = vmatpush.msra.mxu0 0.0
    %v138 = vand.u32 %v91, 4294901760
    %v139 = vsub.f32 %v91, %v138
    %v140 = vand.u32 %v139, 4294901760
    %v141 = vsub.f32 %v139, %v140
    %v142 = vand.u32 %v141, 4294901760
    %143 = vmatpush.msra.mxu0 %v142
    %v144 = vand.u32 %v95, 4294901760
    %145 = vmatmul.f32.gmra.mxu0 %v144
    %v146 = vpop.f32.mrf.mxu0
    %v147 = vadd.f32 %v121, %v146
    %148 = vdwg.mxu0
    %149 = vmatpush.msra.mxu0 0.0
    %150 = vmatpush.msra.mxu0 0.0
    %151 = vmatpush.msra.mxu0 0.0
    %152 = vmatpush.msra.mxu0 0.0
    %153 = vmatpush.msra.mxu0 0.0
    %154 = vmatpush.msra.mxu0 0.0
    %155 = vmatpush.msra.mxu0 0.0
    %156 = vmatpush.msra.mxu0 0.0
    %157 = vmatpush.msra.mxu0 0.0
    %158 = vmatpush.msra.mxu0 0.0
    %159 = vmatpush.msra.mxu0 0.0
    %160 = vmatpush.msra.mxu0 0.0
    %161 = vmatpush.msra.mxu0 0.0
    %162 = vmatpush.msra.mxu0 0.0
    %163 = vmatpush.msra.mxu0 0.0
    %v164 = vand.u32 %v91, 4294901760
    %v165 = vsub.f32 %v91, %v164
    %166 = vmatpush.msra.mxu0 %v165
    %v167 = vand.u32 %v95, 4294901760
    %v168 = vsub.f32 %v95, %v167
    %169 = vmatmul.f32.gmra.mxu0 %v168
    %v170 = vpop.f32.mrf.mxu0
    %v171 = vadd.f32 %v147, %v170
    %172 = vdwg.mxu0
    %173 = vmatpush.msra.mxu0 0.0
    %174 = vmatpush.msra.mxu0 0.0
    %175 = vmatpush.msra.mxu0 0.0
    %176 = vmatpush.msra.mxu0 0.0
    %177 = vmatpush.msra.mxu0 0.0
    %178 = vmatpush.msra.mxu0 0.0
    %179 = vmatpush.msra.mxu0 0.0
    %180 = vmatpush.msra.mxu0 0.0
    %181 = vmatpush.msra.mxu0 0.0
    %182 = vmatpush.msra.mxu0 0.0
    %183 = vmatpush.msra.mxu0 0.0
    %184 = vmatpush.msra.mxu0 0.0
    %185 = vmatpush.msra.mxu0 0.0
    %186 = vmatpush.msra.mxu0 0.0
    %187 = vmatpush.msra.mxu0 0.0
    %v188 = vand.u32 %v91, 4294901760
    %189 = vmatpush.msra.mxu0 %v188
    %v190 = vand.u32 %v95, 4294901760
    %v191 = vsub.f32 %v95, %v190
    %v192 = vand.u32 %v191, 4294901760
    %193 = vmatmul.f32.gmra.mxu0 %v192
    %v194 = vpop.f32.mrf.mxu0
    %v195 = vadd.f32 %v171, %v194
    %196 = vdwg.mxu0
    %197 = vmatpush.msra.mxu0 0.0
    %198 = vmatpush.msra.mxu0 0.0
    %199 = vmatpush.msra.mxu0 0.0
    %200 = vmatpush.msra.mxu0 0.0
    %201 = vmatpush.msra.mxu0 0.0
    %202 = vmatpush.msra.mxu0 0.0
    %203 = vmatpush.msra.mxu0 0.0
    %204 = vmatpush.msra.mxu0 0.0
    %205 = vmatpush.msra.mxu0 0.0
    %206 = vmatpush.msra.mxu0 0.0
    %207 = vmatpush.msra.mxu0 0.0
    %208 = vmatpush.msra.mxu0 0.0
    %209 = vmatpush.msra.mxu0 0.0
    %210 = vmatpush.msra.mxu0 0.0
    %211 = vmatpush.msra.mxu0 0.0
    %v212 = vand.u32 %v91, 4294901760
    %v213 = vsub.f32 %v91, %v212
    %v214 = vand.u32 %v213, 4294901760
    %215 = vmatpush.msra.mxu0 %v214
    %v216 = vand.u32 %v95, 4294901760
    %217 = vmatmul.f32.gmra.mxu0 %v216
    %v218 = vpop.f32.mrf.mxu0
    %v219 = vadd.f32 %v195, %v218
    %220 = vdwg.mxu0
    %221 = vmatpush.msra.mxu0 0.0
    %222 = vmatpush.msra.mxu0 0.0
    %223 = vmatpush.msra.mxu0 0.0
    %224 = vmatpush.msra.mxu0 0.0
    %225 = vmatpush.msra.mxu0 0.0
    %226 = vmatpush.msra.mxu0 0.0
    %227 = vmatpush.msra.mxu0 0.0
    %228 = vmatpush.msra.mxu0 0.0
    %229 = vmatpush.msra.mxu0 0.0
    %230 = vmatpush.msra.mxu0 0.0
    %231 = vmatpush.msra.mxu0 0.0
    %232 = vmatpush.msra.mxu0 0.0
    %233 = vmatpush.msra.mxu0 0.0
    %234 = vmatpush.msra.mxu0 0.0
    %235 = vmatpush.msra.mxu0 0.0
    %v236 = vand.u32 %v91, 4294901760
    %237 = vmatpush.msra.mxu0 %v236
    %v238 = vand.u32 %v95, 4294901760
    %239 = vmatmul.f32.gmra.mxu0 %v238
    %v240 = vpop.f32.mrf.mxu0
    %v241 = vadd.f32 %v219, %v240
    %242 = vdwg.mxu0
    %244 = vset.pattern.permute.xlu0 0
    %245 = vperm.xlu0 %244, %v241
    %v246 = vpop.permute.xlu0 %245
    %v248 = vand.u32 %v89, 4294901760
    %249 = vmatpush.msra.mxu0 %v248
    %v250 = vand.u32 %v88, 4294901760
    %251 = vmatpush.msra.mxu0 %v250
    %v252 = vand.u32 %v87, 4294901760
    %253 = vmatpush.msra.mxu0 %v252
    %v254 = vand.u32 %v86, 4294901760
    %255 = vmatpush.msra.mxu0 %v254
    %v256 = vand.u32 %v85, 4294901760
    %257 = vmatpush.msra.mxu0 %v256
    %v258 = vand.u32 %v84, 4294901760
    %259 = vmatpush.msra.mxu0 %v258
    %v260 = vand.u32 %v83, 4294901760
    %261 = vmatpush.msra.mxu0 %v260
    %v262 = vand.u32 %v82, 4294901760
    %263 = vmatpush.msra.mxu0 %v262
    %v264 = vand.u32 %v81, 4294901760
    %265 = vmatpush.msra.mxu0 %v264
    %v266 = vand.u32 %v80, 4294901760
    %267 = vmatpush.msra.mxu0 %v266
    %v268 = vand.u32 %v79, 4294901760
    %269 = vmatpush.msra.mxu0 %v268
    %v270 = vand.u32 %v78, 4294901760
    %271 = vmatpush.msra.mxu0 %v270
    %v272 = vand.u32 %v77, 4294901760
    %273 = vmatpush.msra.mxu0 %v272
    %v274 = vand.u32 %v76, 4294901760
    %275 = vmatpush.msra.mxu0 %v274
    %v276 = vand.u32 %v75, 4294901760
    %277 = vmatpush.msra.mxu0 %v276
    %v278 = vand.u32 %v74, 4294901760
    %279 = vmatpush.msra.mxu0 %v278
    %v280 = vand.u32 %v73, 4294901760
    %v281 = vsub.f32 %v73, %v280
    %v282 = vand.u32 %v281, 4294901760
    %v283 = vsub.f32 %v281, %v282
    %v284 = vand.u32 %v283, 4294901760
    %285 = vmatmul.f32.gmra.mxu0 %v284
    %v286 = vpop.f32.mrf.mxu0
    %v287 = vadd.f32 %v246, %v286
    %288 = vdwg.mxu0
    %v289 = vand.u32 %v89, 4294901760
    %v290 = vsub.f32 %v89, %v289
    %v291 = vand.u32 %v290, 4294901760
    %v292 = vsub.f32 %v290, %v291
    %v293 = vand.u32 %v292, 4294901760
    %294 = vmatpush.msra.mxu0 %v293
    %v295 = vand.u32 %v88, 4294901760
    %v296 = vsub.f32 %v88, %v295
    %v297 = vand.u32 %v296, 4294901760
    %v298 = vsub.f32 %v296, %v297
    %v299 = vand.u32 %v298, 4294901760
    %300 = vmatpush.msra.mxu0 %v299
    %v301 = vand.u32 %v87, 4294901760
    %v302 = vsub.f32 %v87, %v301
    %v303 = vand.u32 %v302, 4294901760
    %v304 = vsub.f32 %v302, %v303
    %v305 = vand.u32 %v304, 4294901760
    %306 = vmatpush.msra.mxu0 %v305
    %v307 = vand.u32 %v86, 4294901760
    %v308 = vsub.f32 %v86, %v307
    %v309 = vand.u32 %v308, 4294901760
    %v310 = vsub.f32 %v308, %v309
    %v311 = vand.u32 %v310, 4294901760
    %312 = vmatpush.msra.mxu0 %v311
    %v313 = vand.u32 %v85, 4294901760
    %v314 = vsub.f32 %v85, %v313
    %v315 = vand.u32 %v314, 4294901760
    %v316 = vsub.f32 %v314, %v315
    %v317 = vand.u32 %v316, 4294901760
    %318 = vmatpush.msra.mxu0 %v317
    %v319 = vand.u32 %v84, 4294901760
    %v320 = vsub.f32 %v84, %v319
    %v321 = vand.u32 %v320, 4294901760
    %v322 = vsub.f32 %v320, %v321
    %v323 = vand.u32 %v322, 4294901760
    %324 = vmatpush.msra.mxu0 %v323
    %v325 = vand.u32 %v83, 4294901760
    %v326 = vsub.f32 %v83, %v325
    %v327 = vand.u32 %v326, 4294901760
    %v328 = vsub.f32 %v326, %v327
    %v329 = vand.u32 %v328, 4294901760
    %330 = vmatpush.msra.mxu0 %v329
    %v331 = vand.u32 %v82, 4294901760
    %v332 = vsub.f32 %v82, %v331
    %v333 = vand.u32 %v332, 4294901760
    %v334 = vsub.f32 %v332, %v333
    %v335 = vand.u32 %v334, 4294901760
    %336 = vmatpush.msra.mxu0 %v335
    %v337 = vand.u32 %v81, 4294901760
    %v338 = vsub.f32 %v81, %v337
    %v339 = vand.u32 %v338, 4294901760
    %v340 = vsub.f32 %v338, %v339
    %v341 = vand.u32 %v340, 4294901760
    %342 = vmatpush.msra.mxu0 %v341
    %v343 = vand.u32 %v80, 4294901760
    %v344 = vsub.f32 %v80, %v343
    %v345 = vand.u32 %v344, 4294901760
    %v346 = vsub.f32 %v344, %v345
    %v347 = vand.u32 %v346, 4294901760
    %348 = vmatpush.msra.mxu0 %v347
    %v349 = vand.u32 %v79, 4294901760
    %v350 = vsub.f32 %v79, %v349
    %v351 = vand.u32 %v350, 4294901760
    %v352 = vsub.f32 %v350, %v351
    %v353 = vand.u32 %v352, 4294901760
    %354 = vmatpush.msra.mxu0 %v353
    %v355 = vand.u32 %v78, 4294901760
    %v356 = vsub.f32 %v78, %v355
    %v357 = vand.u32 %v356, 4294901760
    %v358 = vsub.f32 %v356, %v357
    %v359 = vand.u32 %v358, 4294901760
    %360 = vmatpush.msra.mxu0 %v359
    %v361 = vand.u32 %v77, 4294901760
    %v362 = vsub.f32 %v77, %v361
    %v363 = vand.u32 %v362, 4294901760
    %v364 = vsub.f32 %v362, %v363
    %v365 = vand.u32 %v364, 4294901760
    %366 = vmatpush.msra.mxu0 %v365
    %v367 = vand.u32 %v76, 4294901760
    %v368 = vsub.f32 %v76, %v367
    %v369 = vand.u32 %v368, 4294901760
    %v370 = vsub.f32 %v368, %v369
    %v371 = vand.u32 %v370, 4294901760
    %372 = vmatpush.msra.mxu0 %v371
    %v373 = vand.u32 %v75, 4294901760
    %v374 = vsub.f32 %v75, %v373
    %v375 = vand.u32 %v374, 4294901760
    %v376 = vsub.f32 %v374, %v375
    %v377 = vand.u32 %v376, 4294901760
    %378 = vmatpush.msra.mxu0 %v377
    %v379 = vand.u32 %v74, 4294901760
    %v380 = vsub.f32 %v74, %v379
    %v381 = vand.u32 %v380, 4294901760
    %v382 = vsub.f32 %v380, %v381
    %v383 = vand.u32 %v382, 4294901760
    %384 = vmatpush.msra.mxu0 %v383
    %v385 = vand.u32 %v73, 4294901760
    %386 = vmatmul.f32.gmra.mxu0 %v385
    %v387 = vpop.f32.mrf.mxu0
    %v388 = vadd.f32 %v287, %v387
    %389 = vdwg.mxu0
    %v390 = vand.u32 %v89, 4294901760
    %v391 = vsub.f32 %v89, %v390
    %392 = vmatpush.msra.mxu0 %v391
    %v393 = vand.u32 %v88, 4294901760
    %v394 = vsub.f32 %v88, %v393
    %395 = vmatpush.msra.mxu0 %v394
    %v396 = vand.u32 %v87, 4294901760
    %v397 = vsub.f32 %v87, %v396
    %398 = vmatpush.msra.mxu0 %v397
    %v399 = vand.u32 %v86, 4294901760
    %v400 = vsub.f32 %v86, %v399
    %401 = vmatpush.msra.mxu0 %v400
    %v402 = vand.u32 %v85, 4294901760
    %v403 = vsub.f32 %v85, %v402
    %404 = vmatpush.msra.mxu0 %v403
    %v405 = vand.u32 %v84, 4294901760
    %v406 = vsub.f32 %v84, %v405
    %407 = vmatpush.msra.mxu0 %v406
    %v408 = vand.u32 %v83, 4294901760
    %v409 = vsub.f32 %v83, %v408
    %410 = vmatpush.msra.mxu0 %v409
    %v411 = vand.u32 %v82, 4294901760
    %v412 = vsub.f32 %v82, %v411
    %413 = vmatpush.msra.mxu0 %v412
    %v414 = vand.u32 %v81, 4294901760
    %v415 = vsub.f32 %v81, %v414
    %416 = vmatpush.msra.mxu0 %v415
    %v417 = vand.u32 %v80, 4294901760
    %v418 = vsub.f32 %v80, %v417
    %419 = vmatpush.msra.mxu0 %v418
    %v420 = vand.u32 %v79, 4294901760
    %v421 = vsub.f32 %v79, %v420
    %422 = vmatpush.msra.mxu0 %v421
    %v423 = vand.u32 %v78, 4294901760
    %v424 = vsub.f32 %v78, %v423
    %425 = vmatpush.msra.mxu0 %v424
    %v426 = vand.u32 %v77, 4294901760
    %v427 = vsub.f32 %v77, %v426
    %428 = vmatpush.msra.mxu0 %v427
    %v429 = vand.u32 %v76, 4294901760
    %v430 = vsub.f32 %v76, %v429
    %431 = vmatpush.msra.mxu0 %v430
    %v432 = vand.u32 %v75, 4294901760
    %v433 = vsub.f32 %v75, %v432
    %434 = vmatpush.msra.mxu0 %v433
    %v435 = vand.u32 %v74, 4294901760
    %v436 = vsub.f32 %v74, %v435
    %437 = vmatpush.msra.mxu0 %v436
    %v438 = vand.u32 %v73, 4294901760
    %v439 = vsub.f32 %v73, %v438
    %440 = vmatmul.f32.gmra.mxu0 %v439
    %v441 = vpop.f32.mrf.mxu0
    %v442 = vadd.f32 %v388, %v441
    %443 = vdwg.mxu0
    %v444 = vand.u32 %v89, 4294901760
    %445 = vmatpush.msra.mxu0 %v444
    %v446 = vand.u32 %v88, 4294901760
    %447 = vmatpush.msra.mxu0 %v446
    %v448 = vand.u32 %v87, 4294901760
    %449 = vmatpush.msra.mxu0 %v448
    %v450 = vand.u32 %v86, 4294901760
    %451 = vmatpush.msra.mxu0 %v450
    %v452 = vand.u32 %v85, 4294901760
    %453 = vmatpush.msra.mxu0 %v452
    %v454 = vand.u32 %v84, 4294901760
    %455 = vmatpush.msra.mxu0 %v454
    %v456 = vand.u32 %v83, 4294901760
    %457 = vmatpush.msra.mxu0 %v456
    %v458 = vand.u32 %v82, 4294901760
    %459 = vmatpush.msra.mxu0 %v458
    %v460 = vand.u32 %v81, 4294901760
    %461 = vmatpush.msra.mxu0 %v460
    %v462 = vand.u32 %v80, 4294901760
    %463 = vmatpush.msra.mxu0 %v462
    %v464 = vand.u32 %v79, 4294901760
    %465 = vmatpush.msra.mxu0 %v464
    %v466 = vand.u32 %v78, 4294901760
    %467 = vmatpush.msra.mxu0 %v466
    %v468 = vand.u32 %v77, 4294901760
    %469 = vmatpush.msra.mxu0 %v468
    %v470 = vand.u32 %v76, 4294901760
    %471 = vmatpush.msra.mxu0 %v470
    %v472 = vand.u32 %v75, 4294901760
    %473 = vmatpush.msra.mxu0 %v472
    %v474 = vand.u32 %v74, 4294901760
    %475 = vmatpush.msra.mxu0 %v474
    %v476 = vand.u32 %v73, 4294901760
    %v477 = vsub.f32 %v73, %v476
    %v478 = vand.u32 %v477, 4294901760
    %479 = vmatmul.f32.gmra.mxu0 %v478
    %v480 = vpop.f32.mrf.mxu0
    %v481 = vadd.f32 %v442, %v480
    %482 = vdwg.mxu0
    %v483 = vand.u32 %v89, 4294901760
    %v484 = vsub.f32 %v89, %v483
    %v485 = vand.u32 %v484, 4294901760
    %486 = vmatpush.msra.mxu0 %v485
    %v487 = vand.u32 %v88, 4294901760
    %v488 = vsub.f32 %v88, %v487
    %v489 = vand.u32 %v488, 4294901760
    %490 = vmatpush.msra.mxu0 %v489
    %v491 = vand.u32 %v87, 4294901760
    %v492 = vsub.f32 %v87, %v491
    %v493 = vand.u32 %v492, 4294901760
    %494 = vmatpush.msra.mxu0 %v493
    %v495 = vand.u32 %v86, 4294901760
    %v496 = vsub.f32 %v86, %v495
    %v497 = vand.u32 %v496, 4294901760
    %498 = vmatpush.msra.mxu0 %v497
    %v499 = vand.u32 %v85, 4294901760
    %v500 = vsub.f32 %v85, %v499
    %v501 = vand.u32 %v500, 4294901760
    %502 = vmatpush.msra.mxu0 %v501
    %v503 = vand.u32 %v84, 4294901760
    %v504 = vsub.f32 %v84, %v503
    %v505 = vand.u32 %v504, 4294901760
    %506 = vmatpush.msra.mxu0 %v505
    %v507 = vand.u32 %v83, 4294901760
    %v508 = vsub.f32 %v83, %v507
    %v509 = vand.u32 %v508, 4294901760
    %510 = vmatpush.msra.mxu0 %v509
    %v511 = vand.u32 %v82, 4294901760
    %v512 = vsub.f32 %v82, %v511
    %v513 = vand.u32 %v512, 4294901760
    %514 = vmatpush.msra.mxu0 %v513
    %v515 = vand.u32 %v81, 4294901760
    %v516 = vsub.f32 %v81, %v515
    %v517 = vand.u32 %v516, 4294901760
    %518 = vmatpush.msra.mxu0 %v517
    %v519 = vand.u32 %v80, 4294901760
    %v520 = vsub.f32 %v80, %v519
    %v521 = vand.u32 %v520, 4294901760
    %522 = vmatpush.msra.mxu0 %v521
    %v523 = vand.u32 %v79, 4294901760
    %v524 = vsub.f32 %v79, %v523
    %v525 = vand.u32 %v524, 4294901760
    %526 = vmatpush.msra.mxu0 %v525
    %v527 = vand.u32 %v78, 4294901760
    %v528 = vsub.f32 %v78, %v527
    %v529 = vand.u32 %v528, 4294901760
    %530 = vmatpush.msra.mxu0 %v529
    %v531 = vand.u32 %v77, 4294901760
    %v532 = vsub.f32 %v77, %v531
    %v533 = vand.u32 %v532, 4294901760
    %534 = vmatpush.msra.mxu0 %v533
    %v535 = vand.u32 %v76, 4294901760
    %v536 = vsub.f32 %v76, %v535
    %v537 = vand.u32 %v536, 4294901760
    %538 = vmatpush.msra.mxu0 %v537
    %v539 = vand.u32 %v75, 4294901760
    %v540 = vsub.f32 %v75, %v539
    %v541 = vand.u32 %v540, 4294901760
    %542 = vmatpush.msra.mxu0 %v541
    %v543 = vand.u32 %v74, 4294901760
    %v544 = vsub.f32 %v74, %v543
    %v545 = vand.u32 %v544, 4294901760
    %546 = vmatpush.msra.mxu0 %v545
    %v547 = vand.u32 %v73, 4294901760
    %548 = vmatmul.f32.gmra.mxu0 %v547
    %v549 = vpop.f32.mrf.mxu0
    %v550 = vadd.f32 %v481, %v549
    %551 = vdwg.mxu0
    %v552 = vand.u32 %v89, 4294901760
    %553 = vmatpush.msra.mxu0 %v552
    %v554 = vand.u32 %v88, 4294901760
    %555 = vmatpush.msra.mxu0 %v554
    %v556 = vand.u32 %v87, 4294901760
    %557 = vmatpush.msra.mxu0 %v556
    %v558 = vand.u32 %v86, 4294901760
    %559 = vmatpush.msra.mxu0 %v558
    %v560 = vand.u32 %v85, 4294901760
    %561 = vmatpush.msra.mxu0 %v560
    %v562 = vand.u32 %v84, 4294901760
    %563 = vmatpush.msra.mxu0 %v562
    %v564 = vand.u32 %v83, 4294901760
    %565 = vmatpush.msra.mxu0 %v564
    %v566 = vand.u32 %v82, 4294901760
    %567 = vmatpush.msra.mxu0 %v566
    %v568 = vand.u32 %v81, 4294901760
    %569 = vmatpush.msra.mxu0 %v568
    %v570 = vand.u32 %v80, 4294901760
    %571 = vmatpush.msra.mxu0 %v570
    %v572 = vand.u32 %v79, 4294901760
    %573 = vmatpush.msra.mxu0 %v572
    %v574 = vand.u32 %v78, 4294901760
    %575 = vmatpush.msra.mxu0 %v574
    %v576 = vand.u32 %v77, 4294901760
    %577 = vmatpush.msra.mxu0 %v576
    %v578 = vand.u32 %v76, 4294901760
    %579 = vmatpush.msra.mxu0 %v578
    %v580 = vand.u32 %v75, 4294901760
    %581 = vmatpush.msra.mxu0 %v580
    %v582 = vand.u32 %v74, 4294901760
    %583 = vmatpush.msra.mxu0 %v582
    %v584 = vand.u32 %v73, 4294901760
    %585 = vmatmul.f32.gmra.mxu0 %v584
    %v586 = vpop.f32.mrf.mxu0
    %v587 = vadd.f32 %v550, %v586
    %588 = vdwg.mxu0
    %v590 = vperm.slane %v70, 0
    %591 = vset.pattern.permute.xlu0 0
    %592 = vperm.xlu0 %591, %v590
    %v593 = vpop.permute.xlu0 %592
    %v595 = vadd.f32 %v587, %v593
    %vm596 = vcmp.gt.f32.partialorder %v69, 0.0
    %v597 = vmax.f32 %v595, 1e-30
    %v598 = vlog2.pop %v597
    %v599 = vmul.f32 %v598, 0.6931472
    %v600 = vsub.f32 %v65, %v599
    %v601 = vmul.f32 %v600, %v67
    %v602 = vsel %vm596, %v601, 0.0
    %v603 = vrot.slane %v91, 4
    %v604 = vadd.f32 %v91, %v603
    %v605 = vrot.slane %v604, 2
    %v606 = vadd.f32 %v604, %v605
    %v607 = vrot.slane %v606, 1
    %v608 = vadd.f32 %v606, %v607
    %s609 = vtos %v608
    %610 = vadd.xlane.f32.xlu0 %v602
    %v611 = vpop.xlane.xlu0 %610
    %v612 = vrot.slane %v611, 4
    %v613 = vadd.f32 %v611, %v612
    %v614 = vrot.slane %v613, 2
    %v615 = vadd.f32 %v613, %v614
    %v616 = vrot.slane %v615, 1
    %v617 = vadd.f32 %v615, %v616
    %s618 = vtos %v617
    %619 = vadd.xlane.f32.xlu0 %v69
    %v620 = vpop.xlane.xlu0 %619
    %v621 = vrot.slane %v620, 4
    %v622 = vadd.f32 %v620, %v621
    %v623 = vrot.slane %v622, 2
    %v624 = vadd.f32 %v622, %v623
    %v625 = vrot.slane %v624, 1
    %v626 = vadd.f32 %v624, %v625
    %s627 = vtos %v626
    %v628 = vlaneseq
    %v629 = vand.u32 %v628, 127
    %vm630 = vcmp.eq.s32.totalorder %v629, 0
    %v631 = vstv %s609
    %v632 = vsel %vm630, %v631, 0.0
    %vm633 = vcmp.eq.s32.totalorder %v629, 1
    %v634 = vstv %s618
    %v635 = vsel %vm633, %v634, 0.0
    %v636 = vadd.f32 %v632, %v635
    %vm637 = vcmp.eq.s32.totalorder %v629, 2
    %v638 = vstv %s627
    %v639 = vsel %vm637, %v638, 0.0
    %v640 = vadd.f32 %v636, %v639
    %v641 = vadd.f32 %v70, %v640
    %642 = vst [vmem:[#allocation2] sm:$0x1] %v641
    // Predicated region
    $region30: #{tpu_custom_call.1} parent=1 // pred_check
      %p643 = pneg %p60
    $region31: #{tpu_custom_call.1} parent=1 // pred_check_branch
      %645 = sbr.rel (%p643) target = $region33
    $region32: #{tpu_custom_call.1} parent=1 // pred_region
      %v646 = vld [vmem:[#allocation2] sm:$0x1]
      %vm647 = vcmp.gt.f32.partialorder %v646, 0.0
      %v648 = vsub.f32 0.0, %v646
      %v649 = vmax.f32 %v646, 1.0
      %651 = vrot.lane.b32.xlu0 %v649, 127
      %v652 = vpop.permute.xlu0 %651
      %v654 = vrcp.pop %v652
      %v655 = vmul.f32 %v652, %v654
      %v656 = vsub.f32 1.0, %v655
      %v657 = vmul.f32 %v654, %v656
      %v658 = vadd.f32 %v654, %v657
      %vm659 = vweird.f32 %v652
      %vm660 = vweird.f32 %v654
      %vm661 = vmor %vm659, %vm660
      %v662 = vsel %vm661, %v654, %v658
      %v663 = vand.u32 2147483647, %v652
      %vm664 = vcmp.eq.f32.partialorder %v663, 8.507059e+37
      %v665 = vand.u32 %v652, 2147483648
      %v666 = vor.u32 1.1754944e-38, %v665
      %v667 = vsel %vm664, %v666, %v662
      %v668 = vmul.f32 %v648, %v667
      %670 = vrot.lane.b32.xlu0 %v668, 1
      %v671 = vpop.permute.xlu0 %670
      %v673 = vsel %vm647, %v671, 0.0
      %v675 = vperm.slane %v673, 0
      %676 = vrot.lane.b32.xlu0 %v675, 126
      %v677 = vpop.permute.xlu0 %676
      %vm679 = vcmask 0
      %680 = vst.msk [vmem:[#allocation9] sm:$0x1] %vm679, %v677
    $region33: #{tpu_custom_call.1} parent=1 // pred_fallthru
      _
    // Predicated region
    $region34: #{tpu_custom_call.1} parent=1 // pred_check
      _
    $region35: #{tpu_custom_call.1} parent=1 // pred_check_branch
      %682 = sbr.rel (0) target = $region37
    $region36: #{tpu_custom_call.1} parent=1 // pred_region
      %684 = vsyncadd [#allocation5], 0
      %s686 = sshll.u32 [#allocation9], 4
      %s687 = int_to_ptr.vmem [resolvable:$true] %s686
      %s688 = sshll.u32 %s3, 4
      %s689 = int_to_ptr.hbm [resolvable:$true] %s688
      %691 = dma.vmem_to_hbm [thread:$0]  %s687, 16, %s689, [#allocation5]
    $region37: #{tpu_custom_call.1} parent=1 // pred_fallthru
      _
    // Predicated region
    $region38: #{tpu_custom_call.1} parent=1 // pred_check
      _
    $region39: #{tpu_custom_call.1} parent=1 // pred_check_branch
      %693 = sbr.rel (0) target = $region41
    $region40: #{tpu_custom_call.1} parent=1 // pred_region
      %695 = dma.done [#allocation5], 16
    $region41: #{tpu_custom_call.1} parent=1 // pred_fallthru
      _
    %696 = vsyncpa [#allocation4], 1
    %697 = vsyncpa [#allocation7], 1
    %698 = vsyncpa [#allocation5], 1

</llo_original>
